<compile_context>
chip_gen: v7x
topology: tpu7x:2x2x1
jax: 0.10.0
libtpu: 0.0.40
codegen_flags: <defaults>
</compile_context>

<pallas_src>
import functools

import jax
import jax.numpy as jnp
from jax.experimental import pallas as pl
from jax.experimental.pallas import tpu as pltpu


def _round_up(n, m):
    return ((n + m - 1) // m) * m


def _gather_cols_kernel(idx_ref, x_ref, o_ref, *scratch,
                        tile_d, d_total, mask_partial_d, use_scratch_acc):
    """One grid step of features[:, mb] as an accumulate-over-D one-hot matmul.

    Grid = (batch tiles, K tiles, D tiles); D is the innermost reduction axis.

    idx_ref: (1, tile_k) int32  global column indices for this K tile (-1 = pad)
    x_ref:   (tile_b, tile_d)   tile of the feature matrix (may overhang B / D)
    o_ref:   (tile_b, tile_k)   output tile (resident across the D axis)
    scratch: optional (tile_b, tile_k) f32 accumulator (non-f32 outputs only)
    """
    d = pl.program_id(2)
    acc_ref = scratch[0] if use_scratch_acc else o_ref

    @pl.when(d == 0)
    def _():
        acc_ref[...] = jnp.zeros_like(acc_ref)

    x_tile = x_ref[...]
    if mask_partial_d:
        # Last D block overhangs the array: zero the garbage columns so the
        # MXU never sees (possibly non-finite) uninitialized VMEM.
        col = d * tile_d + jax.lax.broadcasted_iota(jnp.int32, x_tile.shape, 1)
        x_tile = jnp.where(col < d_total, x_tile, jnp.zeros_like(x_tile))

    # Build the one-hot selector in-kernel (VPU compares, no HBM stream).
    # Padded (-1) indices and indices outside this D tile give all-zero columns.
    idx = idx_ref[0, :]                                    # (tile_k,)
    local = idx - d * tile_d                               # local row in D tile
    rows = jax.lax.broadcasted_iota(
        jnp.int32, (x_tile.shape[1], idx.shape[0]), 0)     # (tile_d, tile_k)
    onehot = (rows == local[None, :]).astype(x_tile.dtype)

    acc_ref[...] += jnp.dot(x_tile, onehot, preferred_element_type=jnp.float32)

    if use_scratch_acc:
        @pl.when(d == pl.num_programs(2) - 1)
        def _():
            o_ref[...] = acc_ref[...].astype(o_ref.dtype)


def causal_pruning_forward(x, mb_idx, *, max_tile_b=256, max_tile_d=1024):
    """Pallas equivalent of `features[:, mb[:output_dim]]`.

    x:      (B, D) feature matrix
    mb_idx: (K,)   int indices of the selected feature columns
    """
    B, D = x.shape
    K = int(mb_idx.shape[0])
    itemsize = jnp.dtype(x.dtype).itemsize

    # --- Tile geometry: (8,128)-aligned blocks, no wrapper-side copy of x ----
    if B <= max_tile_b:
        tile_b = B                              # full dim (allowed even if not %8)
    else:
        nb = -(-B // max_tile_b)                # near-even split, minimal overhang
        tile_b = _round_up(-(-B // nb), 8)
    tile_d = D if D <= max_tile_d else max_tile_d      # 1024 is a 128-multiple

    K_pad = _round_up(K, 128)                   # lane-dense output
    if K_pad <= 512:
        tile_k = K_pad
    elif K_pad % 512 == 0:
        tile_k = 512
    elif K_pad % 256 == 0:
        tile_k = 256
    else:
        tile_k = 128

    n_b = pl.cdiv(B, tile_b)
    n_k = K_pad // tile_k
    n_d = pl.cdiv(D, tile_d)
    mask_partial_d = (D % tile_d) != 0
    use_scratch_acc = x.dtype != jnp.float32

    # Tiny index vector (padded with -1) instead of an HBM one-hot matrix.
    idx_p = jnp.pad(mb_idx.astype(jnp.int32), (0, K_pad - K),
                    constant_values=-1).reshape(1, K_pad)

    # --- VMEM budget: stay under ~3/4 of physical capacity (64 MiB on v7x) ---
    try:
        vmem_cap = int(pltpu.get_tpu_info().vmem_capacity_bytes)
    except Exception:
        vmem_cap = 64 << 20
    budget = (vmem_cap * 3) // 4
    needed = (2 * tile_b * tile_d * itemsize        # x (double buffered)
              + 2 * tile_k * 4                      # idx (double buffered)
              + 2 * tile_b * tile_k * itemsize      # out (double buffered)
              + tile_b * tile_k * 4                 # f32 accumulator
              + 2 * tile_d * tile_k * 4)            # in-kernel one-hot transient
    vmem_limit = int(min(budget, max(32 << 20, 2 * needed)))

    cost = pl.CostEstimate(
        flops=2 * B * D * K_pad,
        transcendentals=0,
        bytes_accessed=int(n_k * B * D * itemsize       # x re-read per K tile
                           + B * K_pad * itemsize       # output
                           + n_b * n_d * K_pad * 4),    # idx re-reads
    )

    kernel = functools.partial(
        _gather_cols_kernel,
        tile_d=tile_d, d_total=D,
        mask_partial_d=mask_partial_d, use_scratch_acc=use_scratch_acc)

    out_padded = pl.pallas_call(
        kernel,
        out_shape=jax.ShapeDtypeStruct((B, K_pad), x.dtype),
        grid_spec=pltpu.PrefetchScalarGridSpec(
            num_scalar_prefetch=0,
            grid=(n_b, n_k, n_d),
            in_specs=[
                pl.BlockSpec((1, tile_k), lambda i, k, d: (0, k)),       # idx
                pl.BlockSpec((tile_b, tile_d), lambda i, k, d: (i, d)),  # x
            ],
            out_specs=pl.BlockSpec((tile_b, tile_k), lambda i, k, d: (i, k)),
            scratch_shapes=([pltpu.VMEM((tile_b, tile_k), jnp.float32)]
                            if use_scratch_acc else []),
        ),
        compiler_params=pltpu.CompilerParams(
            dimension_semantics=("parallel", "parallel", "arbitrary"),
            vmem_limit_bytes=vmem_limit,
        ),
        cost_estimate=cost,
    )(idx_p, x)

    return out_padded[:, :K]


def select_mb_indices(x, output_dim):
    """Deterministic stand-in for S2TMB Markov-blanket discovery.

    # TODO(synk): S2TMB causal discovery (sequential CPU statistical
    # independence tests) has no Pallas equivalent; a deterministic
    # variance-based feature ranking supplies the selected index set here.
    """
    var = jnp.var(x, axis=0)                     # (D,)
    order = jnp.argsort(-var)                    # most "informative" first
    mb = jnp.sort(order[:output_dim])            # mimic mb[:output_dim]
    return mb.astype(jnp.int32)


class CausalPruningLayer:
    def __init__(self, input_dim, output_dim):
        assert output_dim <= input_dim, "output_dim must not exceed input_dim"
        self.input_dim = input_dim
        self.output_dim = output_dim

    def __call__(self, x):
        mb = select_mb_indices(x, self.output_dim)
        return causal_pruning_forward(x, mb)


if __name__ == "__main__":
    key = jax.random.PRNGKey(0)

    # Case 1: aligned shapes (typical configuration).
    B, D, K = 8, 256, 128
    x = jax.random.normal(key, (B, D), dtype=jnp.float32)
    mb = select_mb_indices(x, K)
    out = jax.block_until_ready(causal_pruning_forward(x, mb))
    ref = x[:, mb]
    assert out.shape == (B, K), out.shape
    assert jnp.allclose(out, ref, atol=1e-6), "mismatch (aligned)"

    # Case 2: non-aligned B/D/K (full-dim tiles, K padded to 128, sliced back).
    B2, D2, K2 = 6, 200, 96
    x2 = jax.random.normal(jax.random.PRNGKey(1), (B2, D2), dtype=jnp.float32)
    mb2 = select_mb_indices(x2, K2)
    out2 = jax.block_until_ready(causal_pruning_forward(x2, mb2))
    ref2 = x2[:, mb2]
    assert out2.shape == (B2, K2), out2.shape
    assert jnp.allclose(out2, ref2, atol=1e-6), "mismatch (non-aligned)"

    # Case 3: D > tile_d (multi-step reduction with a partial last D block).
    B3, D3, K3 = 8, 1300, 256
    x3 = jax.random.normal(jax.random.PRNGKey(2), (B3, D3), dtype=jnp.float32)
    mb3 = select_mb_indices(x3, K3)
    out3 = jax.block_until_ready(causal_pruning_forward(x3, mb3))
    ref3 = x3[:, mb3]
    assert out3.shape == (B3, K3), out3.shape
    assert jnp.allclose(out3, ref3, atol=1e-6), "mismatch (partial D block)"

    print("KERNEL_OK")
</pallas_src>

<mosaic_0001>
module attributes {stable_mosaic.version = 11 : i64} {
  func.func @_gather_cols_kernel(%arg0: i32, %arg1: i32, %arg2: i32, %arg3: memref<1x128xi32, #tpu.memory_space<vmem>>, %arg4: memref<8x256xf32, #tpu.memory_space<vmem>>, %arg5: memref<8x128xf32, #tpu.memory_space<vmem>>) attributes {dimension_semantics = [#tpu.dimension_semantics<parallel>, #tpu.dimension_semantics<parallel>, #tpu.dimension_semantics<arbitrary>], iteration_bounds = array<i64: 1, 1, 1>, scalar_prefetch = 0 : i64, scratch_operands = 0 : i64, tpu.core_type = #tpu.core_type<tc>, window_params = [{transform_indices = @transform_0, window_bounds = array<i64: 1, 128>}, {transform_indices = @transform_1, window_bounds = array<i64: 8, 256>}, {transform_indices = @transform_2, window_bounds = array<i64: 8, 128>}]} {
    %c0_i32 = arith.constant 0 : i32
    %0 = arith.cmpi eq, %arg2, %c0_i32 : i32
    %1 = arith.extui %0 : i1 to i32
    %c0_i32_0 = arith.constant 0 : i32
    %2 = arith.cmpi ne, %1, %c0_i32_0 : i32
    scf.if %2 {
      %cst_8 = arith.constant 0.000000e+00 : f32
      %19 = vector.broadcast %cst_8 : f32 to vector<8x128xf32>
      %c0_9 = arith.constant 0 : index
      %c0_10 = arith.constant 0 : index
      %20 = vector.load %arg5[%c0_9, %c0_10] : memref<8x128xf32, #tpu.memory_space<vmem>>, vector<8x128xf32>
      tpu.vector_store %arg5[%c0_9, %c0_10], %19 {strides = array<i32>} : memref<8x128xf32, #tpu.memory_space<vmem>>, vector<8x128xf32>,
    } else {
    }
    %c0 = arith.constant 0 : index
    %c0_1 = arith.constant 0 : index
    %3 = vector.load %arg4[%c0, %c0_1] : memref<8x256xf32, #tpu.memory_space<vmem>>, vector<8x256xf32>
    %c0_2 = arith.constant 0 : index
    %c0_3 = arith.constant 0 : index
    %4 = vector.load %arg3[%c0_2, %c0_3] : memref<1x128xi32, #tpu.memory_space<vmem>>, vector<1x128xi32>
    %5 = vector.shape_cast %4 : vector<1x128xi32> to vector<128xi32>
    %c256_i32 = arith.constant 256 : i32
    %6 = arith.muli %arg2, %c256_i32 : i32
    %7 = vector.broadcast %6 : i32 to vector<128xi32>
    %8 = arith.subi %5, %7 : vector<128xi32>
    %9 = tpu.iota {dimensions = array<i32: 0>} : vector<256x128xi32>
    %10 = vector.shape_cast %8 : vector<128xi32> to vector<1x128xi32>
    %11 = vector.broadcast %10 : vector<1x128xi32> to vector<256x128xi32>
    %12 = arith.cmpi eq, %9, %11 : vector<256x128xi32>
    %13 = arith.extui %12 : vector<256x128xi1> to vector<256x128xi32>
    %14 = arith.sitofp %13 : vector<256x128xi32> to vector<256x128xf32>
    %c0_4 = arith.constant 0 : index
    %c0_5 = arith.constant 0 : index
    %15 = vector.load %arg5[%c0_4, %c0_5] : memref<8x128xf32, #tpu.memory_space<vmem>>, vector<8x128xf32>
    %cst = arith.constant dense<0.000000e+00> : vector<8x128xf32>
    %16 = tpu.matmul %3, %14, %cst {dimension_numbers = #tpu.dot_dimension_numbers<[1], [0], [0], [1], [0, 0, 1, 1], [], []>} : vector<8x256xf32>, vector<256x128xf32>, vector<8x128xf32> -> vector<8x128xf32>
    %17 = arith.addf %15, %16 : vector<8x128xf32>
    %c0_6 = arith.constant 0 : index
    %c0_7 = arith.constant 0 : index
    %18 = vector.load %arg5[%c0_6, %c0_7] : memref<8x128xf32, #tpu.memory_space<vmem>>, vector<8x128xf32>
    tpu.vector_store %arg5[%c0_6, %c0_7], %17 {strides = array<i32>} : memref<8x128xf32, #tpu.memory_space<vmem>>, vector<8x128xf32>,
    return
  }
  func.func @transform_0(%arg0: i32, %arg1: i32, %arg2: i32) -> (i32, i32) {
    %c0_i32 = arith.constant 0 : i32
    %c0_i32_0 = arith.constant 0 : i32
    return %c0_i32, %arg1 : i32, i32
  }
  func.func @transform_1(%arg0: i32, %arg1: i32, %arg2: i32) -> (i32, i32) {
    %c0_i32 = arith.constant 0 : i32
    return %arg0, %arg2 : i32, i32
  }
  func.func @transform_2(%arg0: i32, %arg1: i32, %arg2: i32) -> (i32, i32) {
    %c0_i32 = arith.constant 0 : i32
    return %arg0, %arg1 : i32, i32
  }
}

</mosaic_0001>

<llo_original>
// kernel: tpu_custom_call.1
$region0: #{tpu_custom_call.1}
  #allocation0 [shape = 'u32[]', space=smem, size = 0x4, offset = 0x4, fixed_abs, tag = 'smem constant byte address 0x4 - core index']
  #allocation1 [shape = 'u32[144,128]{1,0:T(1,128)}', space=vmem, size = 0x12000, scoped, tag = 'internal scratch']
  %s0 = inlined_call_operand.hbm [shape: s32[1,128], index: 0, kind: input, shape index: {}]
  %s1 = inlined_call_operand.hbm [shape: f32[8,256], index: 1, kind: input, shape index: {}]
  %s2 = inlined_call_operand.hbm [shape: f32[8,128], index: 2, kind: output, shape index: {}]
  %s3 = sld [smem:[#allocation0]]
  $region30: #{tpu_custom_call.1} parent=0
    _
  %s5 = ssub.s32 1, %s3
  %s6 = scalar_select 0, %s5, %s3
  $region1: #{tpu_custom_call.1} parent=0
    #allocation2 [shape = 'u8[512]{0}', space=vmem, size = 0x400, scoped, tag = 'input window, operand 0, single buffered']
    #allocation3 [shape = 's32[1]{0}', space=sflag, size = 0x4, scoped, tag = 'scoped memory for tpu_custom_call.1']
    #allocation4 [shape = 's32[1]{0}', space=sflag, size = 0x4, scoped, tag = 'scoped memory for tpu_custom_call.1']
    #allocation5 [shape = 'u8[8192]{0}', space=vmem, size = 0x2000, scoped, tag = 'input window, operand 1, single buffered']
    #allocation6 [shape = 's32[1]{0}', space=sflag, size = 0x4, scoped, tag = 'scoped memory for tpu_custom_call.1']
    #allocation7 [shape = 'u8[4096]{0}', space=vmem, size = 0x1000, scoped, tag = 'output window, operand 0, single buffered']
    %7 = vsyncpa [#allocation3], 0
    %8 = vsyncpa [#allocation6], 0
    %9 = vsyncpa [#allocation4], 0
    // Predicated region
    $region2: #{tpu_custom_call.1} parent=1 // pred_check
      _
    $region3: #{tpu_custom_call.1} parent=1 // pred_check_branch
      %11 = sbr.rel (0) target = $region5
    $region4: #{tpu_custom_call.1} parent=1 // pred_region
      %s13 = ssub.s32 16, 16
      %14 = vsyncadd [#allocation3], %s13
      %s16 = sshll.u32 [#allocation2], 4
      %s17 = int_to_ptr.vmem [resolvable:$true] %s16
      %19 = dma.hbm_to_vmem [thread:$0]  %s0, 16, %s17, [#allocation3]
    $region5: #{tpu_custom_call.1} parent=1 // pred_fallthru
      _
    // Predicated region
    $region6: #{tpu_custom_call.1} parent=1 // pred_check
      _
    $region7: #{tpu_custom_call.1} parent=1 // pred_check_branch
      %21 = sbr.rel (0) target = $region9
    $region8: #{tpu_custom_call.1} parent=1 // pred_region
      %s23 = ssub.s32 256, 256
      %24 = vsyncadd [#allocation6], %s23
      %s26 = sshll.u32 [#allocation5], 4
      %s27 = int_to_ptr.vmem [resolvable:$true] %s26
      %29 = dma.hbm_to_vmem [thread:$0]  %s1, 256, %s27, [#allocation6]
    $region9: #{tpu_custom_call.1} parent=1 // pred_fallthru
      _
    // Predicated region
    $region10: #{tpu_custom_call.1} parent=1 // pred_check
      _
    $region11: #{tpu_custom_call.1} parent=1 // pred_check_branch
      %31 = sbr.rel (0) target = $region13
    $region12: #{tpu_custom_call.1} parent=1 // pred_region
      %32 = dma.done [#allocation3], 16
    $region13: #{tpu_custom_call.1} parent=1 // pred_fallthru
      _
    // Predicated region
    $region14: #{tpu_custom_call.1} parent=1 // pred_check
      _
    $region15: #{tpu_custom_call.1} parent=1 // pred_check_branch
      %34 = sbr.rel (0) target = $region17
    $region16: #{tpu_custom_call.1} parent=1 // pred_region
      %35 = dma.done [#allocation6], 256
    $region17: #{tpu_custom_call.1} parent=1 // pred_fallthru
      _
    %p36 = scmp.eq.s32.totalorder 0, 0
    // Predicated region
    $region18: #{tpu_custom_call.1} parent=1 // pred_check
      %p37 = pneg %p36
    $region19: #{tpu_custom_call.1} parent=1 // pred_check_branch
      %39 = sbr.rel (%p37) target = $region21
    $region20: #{tpu_custom_call.1} parent=1 // pred_region
      %40 = vst [vmem:[#allocation7] sm:$0xff] 0.0
    $region21: #{tpu_custom_call.1} parent=1 // pred_fallthru
      _
    %v41 = vld [vmem:[#allocation5] sm:$0xff]
    %v42 = vld [vmem:[#allocation5 + $0x8] sm:$0xff]
    %v43 = vld [vmem:[#allocation2] sm:$0x1]
    %s44 = smul.u32 0, 256
    %v45 = vstv %s44
    %v46 = vsub.s32 %v43, %v45
    %v47 = vlaneseq
    %v48 = vshrl.u32 %v47, 7
    %v49 = vadd.s32 %v48, 8
    %v50 = vadd.s32 %v48, 16
    %v51 = vadd.s32 %v48, 24
    %v52 = vadd.s32 %v48, 32
    %v53 = vadd.s32 %v48, 40
    %v54 = vadd.s32 %v48, 48
    %v55 = vadd.s32 %v48, 56
    %v56 = vadd.s32 %v48, 64
    %v57 = vadd.s32 %v48, 72
    %v58 = vadd.s32 %v48, 80
    %v59 = vadd.s32 %v48, 88
    %v60 = vadd.s32 %v48, 96
    %v61 = vadd.s32 %v48, 104
    %v62 = vadd.s32 %v48, 112
    %v63 = vadd.s32 %v48, 120
    %v64 = vadd.s32 %v48, 128
    %v65 = vadd.s32 %v48, 136
    %v66 = vadd.s32 %v48, 144
    %v67 = vadd.s32 %v48, 152
    %v68 = vadd.s32 %v48, 160
    %v69 = vadd.s32 %v48, 168
    %v70 = vadd.s32 %v48, 176
    %v71 = vadd.s32 %v48, 184
    %v72 = vadd.s32 %v48, 192
    %v73 = vadd.s32 %v48, 200
    %v74 = vadd.s32 %v48, 208
    %v75 = vadd.s32 %v48, 216
    %v76 = vadd.s32 %v48, 224
    %v77 = vadd.s32 %v48, 232
    %v78 = vadd.s32 %v48, 240
    %v79 = vadd.s32 %v48, 248
    %v80 = vlaneseq
    %v81 = vshrl.u32 %v80, 7
    %v82 = vsub.s32 0, %v81
    %v83 = vrot.slane %v46, %v82
    %vm84 = vcmp.eq.s32.totalorder %v48, %v83
    %vm85 = vcmp.eq.s32.totalorder %v49, %v83
    %vm86 = vcmp.eq.s32.totalorder %v50, %v83
    %vm87 = vcmp.eq.s32.totalorder %v51, %v83
    %vm88 = vcmp.eq.s32.totalorder %v52, %v83
    %vm89 = vcmp.eq.s32.totalorder %v53, %v83
    %vm90 = vcmp.eq.s32.totalorder %v54, %v83
    %vm91 = vcmp.eq.s32.totalorder %v55, %v83
    %vm92 = vcmp.eq.s32.totalorder %v56, %v83
    %vm93 = vcmp.eq.s32.totalorder %v57, %v83
    %vm94 = vcmp.eq.s32.totalorder %v58, %v83
    %vm95 = vcmp.eq.s32.totalorder %v59, %v83
    %vm96 = vcmp.eq.s32.totalorder %v60, %v83
    %vm97 = vcmp.eq.s32.totalorder %v61, %v83
    %vm98 = vcmp.eq.s32.totalorder %v62, %v83
    %vm99 = vcmp.eq.s32.totalorder %v63, %v83
    %vm100 = vcmp.eq.s32.totalorder %v64, %v83
    %vm101 = vcmp.eq.s32.totalorder %v65, %v83
    %vm102 = vcmp.eq.s32.totalorder %v66, %v83
    %vm103 = vcmp.eq.s32.totalorder %v67, %v83
    %vm104 = vcmp.eq.s32.totalorder %v68, %v83
    %vm105 = vcmp.eq.s32.totalorder %v69, %v83
    %vm106 = vcmp.eq.s32.totalorder %v70, %v83
    %vm107 = vcmp.eq.s32.totalorder %v71, %v83
    %vm108 = vcmp.eq.s32.totalorder %v72, %v83
    %vm109 = vcmp.eq.s32.totalorder %v73, %v83
    %vm110 = vcmp.eq.s32.totalorder %v74, %v83
    %vm111 = vcmp.eq.s32.totalorder %v75, %v83
    %vm112 = vcmp.eq.s32.totalorder %v76, %v83
    %vm113 = vcmp.eq.s32.totalorder %v77, %v83
    %vm114 = vcmp.eq.s32.totalorder %v78, %v83
    %vm115 = vcmp.eq.s32.totalorder %v79, %v83
    %v116 = vsel %vm84, 1, 0
    %v117 = vsel %vm85, 1, 0
    %v118 = vsel %vm86, 1, 0
    %v119 = vsel %vm87, 1, 0
    %v120 = vsel %vm88, 1, 0
    %v121 = vsel %vm89, 1, 0
    %v122 = vsel %vm90, 1, 0
    %v123 = vsel %vm91, 1, 0
    %v124 = vsel %vm92, 1, 0
    %v125 = vsel %vm93, 1, 0
    %v126 = vsel %vm94, 1, 0
    %v127 = vsel %vm95, 1, 0
    %v128 = vsel %vm96, 1, 0
    %v129 = vsel %vm97, 1, 0
    %v130 = vsel %vm98, 1, 0
    %v131 = vsel %vm99, 1, 0
    %v132 = vsel %vm100, 1, 0
    %v133 = vsel %vm101, 1, 0
    %v134 = vsel %vm102, 1, 0
    %v135 = vsel %vm103, 1, 0
    %v136 = vsel %vm104, 1, 0
    %v137 = vsel %vm105, 1, 0
    %v138 = vsel %vm106, 1, 0
    %v139 = vsel %vm107, 1, 0
    %v140 = vsel %vm108, 1, 0
    %v141 = vsel %vm109, 1, 0
    %v142 = vsel %vm110, 1, 0
    %v143 = vsel %vm111, 1, 0
    %v144 = vsel %vm112, 1, 0
    %v145 = vsel %vm113, 1, 0
    %v146 = vsel %vm114, 1, 0
    %v147 = vsel %vm115, 1, 0
    %v148 = vcvt.s32.f32 %v116
    %v149 = vcvt.s32.f32 %v117
    %v150 = vcvt.s32.f32 %v118
    %v151 = vcvt.s32.f32 %v119
    %v152 = vcvt.s32.f32 %v120
    %v153 = vcvt.s32.f32 %v121
    %v154 = vcvt.s32.f32 %v122
    %v155 = vcvt.s32.f32 %v123
    %v156 = vcvt.s32.f32 %v124
    %v157 = vcvt.s32.f32 %v125
    %v158 = vcvt.s32.f32 %v126
    %v159 = vcvt.s32.f32 %v127
    %v160 = vcvt.s32.f32 %v128
    %v161 = vcvt.s32.f32 %v129
    %v162 = vcvt.s32.f32 %v130
    %v163 = vcvt.s32.f32 %v131
    %v164 = vcvt.s32.f32 %v132
    %v165 = vcvt.s32.f32 %v133
    %v166 = vcvt.s32.f32 %v134
    %v167 = vcvt.s32.f32 %v135
    %v168 = vcvt.s32.f32 %v136
    %v169 = vcvt.s32.f32 %v137
    %v170 = vcvt.s32.f32 %v138
    %v171 = vcvt.s32.f32 %v139
    %v172 = vcvt.s32.f32 %v140
    %v173 = vcvt.s32.f32 %v141
    %v174 = vcvt.s32.f32 %v142
    %v175 = vcvt.s32.f32 %v143
    %v176 = vcvt.s32.f32 %v144
    %v177 = vcvt.s32.f32 %v145
    %v178 = vcvt.s32.f32 %v146
    %v179 = vcvt.s32.f32 %v147
    %v180 = vld [vmem:[#allocation7] sm:$0xff]
    %181 = vmatprep.subr.mxu0 0.0
    %182 = vmatpush1.msra.mxu0 %v148
    %183 = vmatprep.subr.mxu0 0.0
    %184 = vmatpush1.msra.mxu0 %v149
    %185 = vmatprep.subr.mxu0 0.0
    %186 = vmatpush1.msra.mxu0 %v150
    %187 = vmatprep.subr.mxu0 0.0
    %188 = vmatpush1.msra.mxu0 %v151
    %189 = vmatprep.subr.mxu0 0.0
    %190 = vmatpush1.msra.mxu0 %v152
    %191 = vmatprep.subr.mxu0 0.0
    %192 = vmatpush1.msra.mxu0 %v153
    %193 = vmatprep.subr.mxu0 0.0
    %194 = vmatpush1.msra.mxu0 %v154
    %195 = vmatprep.subr.mxu0 0.0
    %196 = vmatpush1.msra.mxu0 %v155
    %197 = vmatprep.subr.mxu0 0.0
    %198 = vmatpush1.msra.mxu0 %v156
    %199 = vmatprep.subr.mxu0 0.0
    %200 = vmatpush1.msra.mxu0 %v157
    %201 = vmatprep.subr.mxu0 0.0
    %202 = vmatpush1.msra.mxu0 %v158
    %203 = vmatprep.subr.mxu0 0.0
    %204 = vmatpush1.msra.mxu0 %v159
    %205 = vmatprep.subr.mxu0 0.0
    %206 = vmatpush1.msra.mxu0 %v160
    %207 = vmatprep.subr.mxu0 0.0
    %208 = vmatpush1.msra.mxu0 %v161
    %209 = vmatprep.subr.mxu0 0.0
    %210 = vmatpush1.msra.mxu0 %v162
    %211 = vmatprep.subr.mxu0 0.0
    %212 = vmatpush1.msra.mxu0 %v163
    %213 = vmatprep.subr.mxu0 0.0
    %214 = vmatpush1.msra.mxu0 %v164
    %215 = vmatprep.subr.mxu0 0.0
    %216 = vmatpush1.msra.mxu0 %v165
    %217 = vmatprep.subr.mxu0 0.0
    %218 = vmatpush1.msra.mxu0 %v166
    %219 = vmatprep.subr.mxu0 0.0
    %220 = vmatpush1.msra.mxu0 %v167
    %221 = vmatprep.subr.mxu0 0.0
    %222 = vmatpush1.msra.mxu0 %v168
    %223 = vmatprep.subr.mxu0 0.0
    %224 = vmatpush1.msra.mxu0 %v169
    %225 = vmatprep.subr.mxu0 0.0
    %226 = vmatpush1.msra.mxu0 %v170
    %227 = vmatprep.subr.mxu0 0.0
    %228 = vmatpush1.msra.mxu0 %v171
    %229 = vmatprep.subr.mxu0 0.0
    %230 = vmatpush1.msra.mxu0 %v172
    %231 = vmatprep.subr.mxu0 0.0
    %232 = vmatpush1.msra.mxu0 %v173
    %233 = vmatprep.subr.mxu0 0.0
    %234 = vmatpush1.msra.mxu0 %v174
    %235 = vmatprep.subr.mxu0 0.0
    %236 = vmatpush1.msra.mxu0 %v175
    %237 = vmatprep.subr.mxu0 0.0
    %238 = vmatpush1.msra.mxu0 %v176
    %239 = vmatprep.subr.mxu0 0.0
    %240 = vmatpush1.msra.mxu0 %v177
    %241 = vmatprep.subr.mxu0 0.0
    %242 = vmatpush1.msra.mxu0 %v178
    %243 = vmatprep.subr.mxu0 0.0
    %244 = vmatpush1.msra.mxu0 %v179
    %245 = vmatprep.mubr.f32.mxu0 %v42
    %246 = vmatmul.mubr.f32.gmra.mrb[0].mxu0 %v41
    %v247 = vpop.f32.mrb[0].mxu0
    %v248 = vadd.f32 0.0, %v247
    %v249 = vpop.f32.mrb[0].mxu0
    %250 = vdwg.mxu0
    %v251 = vadd.f32 %v180, %v248
    %252 = vst [vmem:[#allocation7] sm:$0xff] %v251
    // Predicated region
    $region22: #{tpu_custom_call.1} parent=1 // pred_check
      _
    $region23: #{tpu_custom_call.1} parent=1 // pred_check_branch
      %254 = sbr.rel (0) target = $region25
    $region24: #{tpu_custom_call.1} parent=1 // pred_region
      %s256 = ssub.s32 128, 128
      %257 = vsyncadd [#allocation4], %s256
      %s259 = sshll.u32 [#allocation7], 4
      %s260 = int_to_ptr.vmem [resolvable:$true] %s259
      %262 = dma.vmem_to_hbm [thread:$0]  %s260, 128, %s2, [#allocation4]
    $region25: #{tpu_custom_call.1} parent=1 // pred_fallthru
      _
    // Predicated region
    $region26: #{tpu_custom_call.1} parent=1 // pred_check
      _
    $region27: #{tpu_custom_call.1} parent=1 // pred_check_branch
      %264 = sbr.rel (0) target = $region29
    $region28: #{tpu_custom_call.1} parent=1 // pred_region
      %265 = dma.done [#allocation4], 128
    $region29: #{tpu_custom_call.1} parent=1 // pred_fallthru
      _
    %266 = vsyncpa [#allocation3], 1
    %267 = vsyncpa [#allocation6], 1
    %268 = vsyncpa [#allocation4], 1

</llo_original>
